<compile_context>
chip_gen: v5e
topology: v5e:2x2
jax: 0.10.0
libtpu: 0.0.40
codegen_flags: <defaults>
</compile_context>

<pallas_src>
import jax
import jax.numpy as jnp
from jax.experimental import pallas as pl
from jax.experimental.pallas import tpu as pltpu


def _round_up(x: int, m: int) -> int:
    return ((x + m - 1) // m) * m


def _hw_profile():
    """Generation-aware knobs: (is_v7x, lane_mult, vmem_limit_cap_bytes)."""
    kind = jax.devices()[0].device_kind.lower()
    is_v7x = "7" in kind
    is_128_mxu = ("v5" in kind) or ("v4" in kind) or ("v3" in kind)
    default_phys = (64 << 20) if is_v7x else (128 << 20)
    try:  # hardware query only; defaults keep heuristics sane, never correctness
        vmem_phys = int(getattr(pltpu.get_tpu_info(), "vmem_capacity_bytes",
                                default_phys) or default_phys)
    except Exception:
        vmem_phys = default_phys
    is_v7x = is_v7x or vmem_phys <= (64 << 20)
    lane_mult = 128 if is_128_mxu else 256          # MXU N-pass width
    if is_v7x:
        limit_cap = 52 << 20                        # headroom under 64 MiB/TC
    else:
        limit_cap = max(32 << 20, min(100 << 20, vmem_phys - (8 << 20)))
    return is_v7x, lane_mult, limit_cap


def mim_prediction_kernel(x_ref, w1_ref, b1_ref, g_ref, beta_ref,
                          w2_ref, b2_ref, o_ref, hn_ref):
    # Grid: (row tiles [parallel], label tiles [arbitrary]).  Linear-1 + ReLU
    # + LayerNorm run once per row tile (first label tile) and are cached in
    # the persistent hn_ref VMEM scratch; every label tile then runs one MXU
    # pass of Linear-2 against its w2 slab.
    @pl.when(pl.program_id(1) == 0)
    def _():
        # Linear 1: (tm, H) @ (H, H) on the MXU, operands in native dtype,
        # f32 accumulation.
        h = jnp.dot(x_ref[...], w1_ref[...], preferred_element_type=jnp.float32)
        h = h + b1_ref[...].astype(jnp.float32)
        h = jnp.maximum(h, 0.0)                                  # ReLU (VPU)
        # BertLayerNorm: biased variance, eps inside rsqrt, f32 statistics.
        # Cross-lane means hit the XLU and rsqrt the EUP, overlapping the MXU.
        u = jnp.mean(h, axis=-1, keepdims=True)
        d = h - u
        s = jnp.mean(d * d, axis=-1, keepdims=True)
        hn = d * jax.lax.rsqrt(s + 1e-12)
        hn = hn * g_ref[...].astype(jnp.float32) + beta_ref[...].astype(jnp.float32)
        hn_ref[...] = hn.astype(hn_ref.dtype)

    # Linear 2 label tile: (tm, H) @ (H, tn) on the MXU, f32 accumulation.
    out = jnp.dot(hn_ref[...], w2_ref[...], preferred_element_type=jnp.float32)
    out = out + b2_ref[...].astype(jnp.float32)
    o_ref[...] = out.astype(o_ref.dtype)


def mim_prediction(x, w1, b1, gamma, beta, w2, b2, *, tm=256, tn=None):
    """MimPrediction forward: Linear(H,H) -> ReLU -> LN(eps=1e-12) -> Linear(H,L).

    x: (N, H); weights stored (in_features, out_features); biases / LN params
    (dim,) or (1, dim).  Returns (N, L) in x.dtype.

    Production path: pass bf16 activations/weights (f32 operands decompose
    into several extra MXU passes on v5e/v6e); accumulation, bias adds and
    LayerNorm statistics always run in f32 inside the kernel.
    """
    N, H = x.shape
    L = w2.shape[1]
    assert w1.shape == (H, H) and w2.shape[0] == H

    b1 = jnp.reshape(b1, (1, H))
    gamma = jnp.reshape(gamma, (1, H))
    beta = jnp.reshape(beta, (1, H))
    b2 = jnp.reshape(b2, (1, L))

    is_v7x, lane_mult, limit_cap = _hw_profile()

    # --- Row tile -----------------------------------------------------------
    # Sublane packing: 8 rows/vreg for f32, 16 for bf16.
    row_mult = 8 * max(1, 4 // jnp.dtype(x.dtype).itemsize)
    tm = min(tm, _round_up(N, row_mult))
    tm = max(row_mult, (tm // row_mult) * row_mult)
    if is_v7x and N > tm:
        # v7x only: keep >= 2 programs on the parallel row axis so both
        # TensorCores get work.  v5e/v6e (single TC): keep tm large.
        tm = max(row_mult, min(tm, _round_up(pl.cdiv(N, 2), row_mult)))
    ni = pl.cdiv(N, tm)               # ragged boundary row block is masked

    # --- Label dim: lane-dense, full-MXU-pass output width -------------------
    l_pad = _round_up(L, lane_mult)
    if l_pad != L:
        w2 = jnp.pad(w2, ((0, 0), (0, l_pad - L)))
        b2 = jnp.pad(b2, ((0, 0), (0, l_pad - L)))

    out_dtype = x.dtype
    xb = jnp.dtype(x.dtype).itemsize
    w1b = jnp.dtype(w1.dtype).itemsize
    w2b = jnp.dtype(w2.dtype).itemsize
    ob = jnp.dtype(out_dtype).itemsize
    hn_dtype = w2.dtype               # dtype fed to the second MXU matmul
    hnb = jnp.dtype(hn_dtype).itemsize

    # VMEM budget, conservatively assuming double buffering everywhere (valid
    # whether or not the invariants end up single-buffered) + f32 spill margin.
    base_need = (2 * tm * H * xb            # x row tiles
                 + 2 * H * H * w1b          # w1
                 + 2 * 3 * H * w1b          # b1 / gamma / beta
                 + tm * H * hnb             # hn scratch (single, persistent)
                 + 4 * tm * H * 4)          # f32 temporaries (h, d, hn, spills)

    def tile_need(width):
        return (base_need
                + 2 * H * width * w2b       # w2 label slab
                + 2 * width * w2b           # b2
                + 2 * tm * width * ob       # output tiles
                + tm * width * 4)           # f32 Linear-2 accumulator

    budget = int(0.75 * limit_cap)
    if tn is not None:
        assert tn % 128 == 0, "label tile must be a multiple of 128 lanes"
        tn = min(tn, l_pad)
    elif tile_need(l_pad) <= budget:
        tn = l_pad                          # whole w2 resident, fetched once
    else:
        tn = 1024                           # stream w2 in (H, tn) slabs
        while tn > 256 and tile_need(tn) > budget:
            tn //= 2
    nj = pl.cdiv(l_pad, tn)

    vmem_need = tile_need(tn)
    vmem_limit = int(min(max(int(1.3 * vmem_need) + (8 << 20), 32 << 20), limit_cap))

    # TODO(synk): for very large H (w1 + one row tile alone overflow VMEM) add
    # a K-tiled Linear-1 grid axis with an f32 accumulator; unnecessary for
    # BERT-base/large hidden sizes.

    def build_specs(single_buffer_invariants):
        inv = ({"pipeline_mode": pl.Buffered(1)}
               if single_buffer_invariants else {})
        # w2 / b2 are grid-invariant only when the whole label dim is one tile.
        w2_inv = inv if nj == 1 else {}
        in_specs = [
            pl.BlockSpec((tm, H), lambda i, j: (i, 0)),            # x row tile
            pl.BlockSpec((H, H), lambda i, j: (0, 0), **inv),      # w1
            pl.BlockSpec((1, H), lambda i, j: (0, 0), **inv),      # b1
            pl.BlockSpec((1, H), lambda i, j: (0, 0), **inv),      # gamma
            pl.BlockSpec((1, H), lambda i, j: (0, 0), **inv),      # beta
            pl.BlockSpec((H, tn), lambda i, j: (0, j), **w2_inv),  # w2 slab
            pl.BlockSpec((1, tn), lambda i, j: (0, j), **w2_inv),  # b2 slab
        ]
        out_spec = pl.BlockSpec((tm, tn), lambda i, j: (i, j))
        return in_specs, out_spec

    def run(single_buffer_invariants):
        in_specs, out_spec = build_specs(single_buffer_invariants)
        return pl.pallas_call(
            mim_prediction_kernel,
            out_shape=jax.ShapeDtypeStruct((N, l_pad), out_dtype),
            grid_spec=pltpu.PrefetchScalarGridSpec(
                num_scalar_prefetch=0,
                grid=(ni, nj),
                in_specs=in_specs,
                out_specs=out_spec,
                scratch_shapes=[pltpu.VMEM((tm, H), hn_dtype)],
            ),
            compiler_params=pltpu.CompilerParams(
                dimension_semantics=("parallel", "arbitrary"),
                vmem_limit_bytes=vmem_limit),
        )(x, w1, b1, gamma, beta, w2, b2)

    try:
        out = run(single_buffer_invariants=True)
    except (TypeError, ValueError, NotImplementedError,
            pltpu.LoweringException) as e:
        # pipeline_mode=pl.Buffered(1) unsupported on this jax/pallas build.
        # Retry with default double-buffered invariants: the VMEM budget above
        # already assumes double buffering, so only slack is lost.  Genuine
        # spec/shape errors reproduce identically on the retry and surface.
        print("[mim_prediction] single-buffered invariants unavailable "
              f"({type(e).__name__}); retrying with default buffering")
        out = run(single_buffer_invariants=False)

    return out if l_pad == L else out[:, :L]


def reference(x, w1, b1, gamma, beta, w2, b2):
    h = x @ w1 + b1
    h = jnp.maximum(h, 0.0)
    u = jnp.mean(h, axis=-1, keepdims=True)
    s = jnp.mean((h - u) ** 2, axis=-1, keepdims=True)
    hn = (h - u) / jnp.sqrt(s + 1e-12)
    hn = hn * gamma + beta
    return hn @ w2 + b2


if __name__ == "__main__":
    batch, seq, hidden, label_dim = 2, 8, 32, 16

    key = jax.random.PRNGKey(0)
    k_in, k_w1, k_b1, k_w2, k_b2, k_w2b, k_b2b = jax.random.split(key, 7)

    # Deterministic synthetic parameters (module __init__ shapes).
    x = jax.random.normal(k_in, (batch, seq, hidden), dtype=jnp.float32)
    w1 = jax.random.normal(k_w1, (hidden, hidden), dtype=jnp.float32) * 0.05
    b1 = jax.random.normal(k_b1, (1, hidden), dtype=jnp.float32) * 0.01
    gamma = jnp.ones((1, hidden), dtype=jnp.float32)
    beta = jnp.zeros((1, hidden), dtype=jnp.float32)
    w2 = jax.random.normal(k_w2, (hidden, label_dim), dtype=jnp.float32) * 0.05
    b2 = jax.random.normal(k_b2, (1, label_dim), dtype=jnp.float32) * 0.01

    x2d = x.reshape(batch * seq, hidden)
    ref = reference(x2d, w1, b1, gamma, beta, w2, b2)

    # 1) f32 path, single label tile: tight correctness check.
    out = jax.block_until_ready(mim_prediction(x2d, w1, b1, gamma, beta, w2, b2))
    assert out.shape == (batch * seq, label_dim)
    assert jnp.allclose(out, ref, atol=1e-4, rtol=1e-4), "f32 mismatch vs reference"

    # 2) bf16 MXU operand path (production config), f32 accumulation inside.
    cast = lambda a: a.astype(jnp.bfloat16)
    out_bf16 = jax.block_until_ready(
        mim_prediction(cast(x2d), cast(w1), cast(b1), cast(gamma),
                       cast(beta), cast(w2), cast(b2)))
    assert out_bf16.shape == (batch * seq, label_dim)
    assert jnp.allclose(out_bf16.astype(jnp.float32), ref,
                        atol=5e-2, rtol=5e-2), "bf16 mismatch vs reference"

    # 3) L-tiled path: larger label dim with a forced small label tile so the
    #    second grid axis (streamed w2 slabs + persistent hn scratch) runs.
    label_dim2 = 300
    w2_big = jax.random.normal(k_w2b, (hidden, label_dim2), dtype=jnp.float32) * 0.05
    b2_big = jax.random.normal(k_b2b, (1, label_dim2), dtype=jnp.float32) * 0.01
    ref2 = reference(x2d, w1, b1, gamma, beta, w2_big, b2_big)
    out2 = jax.block_until_ready(
        mim_prediction(x2d, w1, b1, gamma, beta, w2_big, b2_big, tn=128))
    assert out2.shape == (batch * seq, label_dim2)
    assert jnp.allclose(out2, ref2, atol=1e-4, rtol=1e-4), "L-tiled mismatch vs reference"

    # Reshape back to (batch, seq, label_dim) for module-equivalent output.
    _ = out.reshape(batch, seq, label_dim)

    print("KERNEL_OK")
</pallas_src>

<mosaic_0001>
module attributes {stable_mosaic.version = 11 : i64} {
  func.func @mim_prediction_kernel(%arg0: i32, %arg1: i32, %arg2: memref<16x32xf32, #tpu.memory_space<vmem>>, %arg3: memref<32x32xf32, #tpu.memory_space<vmem>>, %arg4: memref<1x32xf32, #tpu.memory_space<vmem>>, %arg5: memref<1x32xf32, #tpu.memory_space<vmem>>, %arg6: memref<1x32xf32, #tpu.memory_space<vmem>>, %arg7: memref<32x256xf32, #tpu.memory_space<vmem>>, %arg8: memref<1x256xf32, #tpu.memory_space<vmem>>, %arg9: memref<16x256xf32, #tpu.memory_space<vmem>>, %arg10: memref<16x32xf32, #tpu.memory_space<vmem>>) attributes {dimension_semantics = [#tpu.dimension_semantics<parallel>, #tpu.dimension_semantics<arbitrary>], iteration_bounds = array<i64: 1, 1>, scalar_prefetch = 0 : i64, scratch_operands = 1 : i64, tpu.core_type = #tpu.core_type<tc>, window_params = [{transform_indices = @transform_0, window_bounds = array<i64: 16, 32>}, {pipeline_mode = #tpu.pipeline_mode<synchronous>, transform_indices = @transform_1, window_bounds = array<i64: 32, 32>}, {pipeline_mode = #tpu.pipeline_mode<synchronous>, transform_indices = @transform_2, window_bounds = array<i64: 1, 32>}, {pipeline_mode = #tpu.pipeline_mode<synchronous>, transform_indices = @transform_3, window_bounds = array<i64: 1, 32>}, {pipeline_mode = #tpu.pipeline_mode<synchronous>, transform_indices = @transform_4, window_bounds = array<i64: 1, 32>}, {pipeline_mode = #tpu.pipeline_mode<synchronous>, transform_indices = @transform_5, window_bounds = array<i64: 32, 256>}, {pipeline_mode = #tpu.pipeline_mode<synchronous>, transform_indices = @transform_6, window_bounds = array<i64: 1, 256>}, {transform_indices = @transform_7, window_bounds = array<i64: 16, 256>}]} {
    %c0_i32 = arith.constant 0 : i32
    %0 = arith.cmpi eq, %arg1, %c0_i32 : i32
    %1 = arith.extui %0 : i1 to i32
    %c0_i32_0 = arith.constant 0 : i32
    %2 = arith.cmpi ne, %1, %c0_i32_0 : i32
    scf.if %2 {
      %c0_8 = arith.constant 0 : index
      %c0_9 = arith.constant 0 : index
      %10 = vector.load %arg2[%c0_8, %c0_9] : memref<16x32xf32, #tpu.memory_space<vmem>>, vector<16x32xf32>
      %c0_10 = arith.constant 0 : index
      %c0_11 = arith.constant 0 : index
      %11 = vector.load %arg3[%c0_10, %c0_11] : memref<32x32xf32, #tpu.memory_space<vmem>>, vector<32x32xf32>
      %cst_12 = arith.constant dense<0.000000e+00> : vector<16x32xf32>
      %12 = tpu.matmul %10, %11, %cst_12 {dimension_numbers = #tpu.dot_dimension_numbers<[1], [0], [0], [1], [0, 0, 1, 1], [], []>} : vector<16x32xf32>, vector<32x32xf32>, vector<16x32xf32> -> vector<16x32xf32>
      %c0_13 = arith.constant 0 : index
      %c0_14 = arith.constant 0 : index
      %13 = vector.load %arg4[%c0_13, %c0_14] : memref<1x32xf32, #tpu.memory_space<vmem>>, vector<1x32xf32>
      %14 = vector.broadcast %13 : vector<1x32xf32> to vector<16x32xf32>
      %15 = arith.addf %12, %14 : vector<16x32xf32>
      %cst_15 = arith.constant 0.000000e+00 : f32
      %16 = vector.broadcast %cst_15 : f32 to vector<16x32xf32>
      %17 = arith.maximumf %15, %16 : vector<16x32xf32>
      %cst_16 = arith.constant dense<0.000000e+00> : vector<16xf32>
      %18 = vector.multi_reduction <add>, %17, %cst_16 [1] : vector<16x32xf32> to vector<16xf32>
      %19 = vector.shape_cast %18 : vector<16xf32> to vector<16x1xf32>
      %cst_17 = arith.constant 3.200000e+01 : f32
      %20 = vector.broadcast %cst_17 : f32 to vector<16x1xf32>
      %21 = arith.divf %19, %20 : vector<16x1xf32>
      %22 = vector.broadcast %21 : vector<16x1xf32> to vector<16x32xf32>
      %23 = arith.subf %17, %22 : vector<16x32xf32>
      %24 = arith.mulf %23, %23 : vector<16x32xf32>
      %cst_18 = arith.constant dense<0.000000e+00> : vector<16xf32>
      %25 = vector.multi_reduction <add>, %24, %cst_18 [1] : vector<16x32xf32> to vector<16xf32>
      %26 = vector.shape_cast %25 : vector<16xf32> to vector<16x1xf32>
      %cst_19 = arith.constant 3.200000e+01 : f32
      %27 = vector.broadcast %cst_19 : f32 to vector<16x1xf32>
      %28 = arith.divf %26, %27 : vector<16x1xf32>
      %cst_20 = arith.constant 9.99999996E-13 : f32
      %29 = vector.broadcast %cst_20 : f32 to vector<16x1xf32>
      %30 = arith.addf %28, %29 : vector<16x1xf32>
      %31 = math.rsqrt %30 : vector<16x1xf32>
      %32 = vector.broadcast %31 : vector<16x1xf32> to vector<16x32xf32>
      %33 = arith.mulf %23, %32 : vector<16x32xf32>
      %c0_21 = arith.constant 0 : index
      %c0_22 = arith.constant 0 : index
      %34 = vector.load %arg5[%c0_21, %c0_22] : memref<1x32xf32, #tpu.memory_space<vmem>>, vector<1x32xf32>
      %35 = vector.broadcast %34 : vector<1x32xf32> to vector<16x32xf32>
      %36 = arith.mulf %33, %35 : vector<16x32xf32>
      %c0_23 = arith.constant 0 : index
      %c0_24 = arith.constant 0 : index
      %37 = vector.load %arg6[%c0_23, %c0_24] : memref<1x32xf32, #tpu.memory_space<vmem>>, vector<1x32xf32>
      %38 = vector.broadcast %37 : vector<1x32xf32> to vector<16x32xf32>
      %39 = arith.addf %36, %38 : vector<16x32xf32>
      %c0_25 = arith.constant 0 : index
      %c0_26 = arith.constant 0 : index
      %40 = vector.load %arg10[%c0_25, %c0_26] : memref<16x32xf32, #tpu.memory_space<vmem>>, vector<16x32xf32>
      tpu.vector_store %arg10[%c0_25, %c0_26], %39 {strides = array<i32>} : memref<16x32xf32, #tpu.memory_space<vmem>>, vector<16x32xf32>,
    } else {
    }
    %c0 = arith.constant 0 : index
    %c0_1 = arith.constant 0 : index
    %3 = vector.load %arg10[%c0, %c0_1] : memref<16x32xf32, #tpu.memory_space<vmem>>, vector<16x32xf32>
    %c0_2 = arith.constant 0 : index
    %c0_3 = arith.constant 0 : index
    %4 = vector.load %arg7[%c0_2, %c0_3] : memref<32x256xf32, #tpu.memory_space<vmem>>, vector<32x256xf32>
    %cst = arith.constant dense<0.000000e+00> : vector<16x256xf32>
    %5 = tpu.matmul %3, %4, %cst {dimension_numbers = #tpu.dot_dimension_numbers<[1], [0], [0], [1], [0, 0, 1, 1], [], []>} : vector<16x32xf32>, vector<32x256xf32>, vector<16x256xf32> -> vector<16x256xf32>
    %c0_4 = arith.constant 0 : index
    %c0_5 = arith.constant 0 : index
    %6 = vector.load %arg8[%c0_4, %c0_5] : memref<1x256xf32, #tpu.memory_space<vmem>>, vector<1x256xf32>
    %7 = vector.broadcast %6 : vector<1x256xf32> to vector<16x256xf32>
    %8 = arith.addf %5, %7 : vector<16x256xf32>
    %c0_6 = arith.constant 0 : index
    %c0_7 = arith.constant 0 : index
    %9 = vector.load %arg9[%c0_6, %c0_7] : memref<16x256xf32, #tpu.memory_space<vmem>>, vector<16x256xf32>
    tpu.vector_store %arg9[%c0_6, %c0_7], %8 {strides = array<i32>} : memref<16x256xf32, #tpu.memory_space<vmem>>, vector<16x256xf32>,
    return
  }
  func.func @transform_0(%arg0: i32, %arg1: i32) -> (i32, i32) {
    %c0_i32 = arith.constant 0 : i32
    %c0_i32_0 = arith.constant 0 : i32
    return %arg0, %c0_i32 : i32, i32
  }
  func.func @transform_1(%arg0: i32, %arg1: i32) -> (i32, i32) {
    %c0_i32 = arith.constant 0 : i32
    %c0_i32_0 = arith.constant 0 : i32
    %c0_i32_1 = arith.constant 0 : i32
    return %c0_i32, %c0_i32_0 : i32, i32
  }
  func.func @transform_2(%arg0: i32, %arg1: i32) -> (i32, i32) {
    %c0_i32 = arith.constant 0 : i32
    %c0_i32_0 = arith.constant 0 : i32
    %c0_i32_1 = arith.constant 0 : i32
    return %c0_i32, %c0_i32_0 : i32, i32
  }
  func.func @transform_3(%arg0: i32, %arg1: i32) -> (i32, i32) {
    %c0_i32 = arith.constant 0 : i32
    %c0_i32_0 = arith.constant 0 : i32
    %c0_i32_1 = arith.constant 0 : i32
    return %c0_i32, %c0_i32_0 : i32, i32
  }
  func.func @transform_4(%arg0: i32, %arg1: i32) -> (i32, i32) {
    %c0_i32 = arith.constant 0 : i32
    %c0_i32_0 = arith.constant 0 : i32
    %c0_i32_1 = arith.constant 0 : i32
    return %c0_i32, %c0_i32_0 : i32, i32
  }
  func.func @transform_5(%arg0: i32, %arg1: i32) -> (i32, i32) {
    %c0_i32 = arith.constant 0 : i32
    %c0_i32_0 = arith.constant 0 : i32
    return %c0_i32, %arg1 : i32, i32
  }
  func.func @transform_6(%arg0: i32, %arg1: i32) -> (i32, i32) {
    %c0_i32 = arith.constant 0 : i32
    %c0_i32_0 = arith.constant 0 : i32
    return %c0_i32, %arg1 : i32, i32
  }
  func.func @transform_7(%arg0: i32, %arg1: i32) -> (i32, i32) {
    %c0_i32 = arith.constant 0 : i32
    return %arg0, %arg1 : i32, i32
  }
}

</mosaic_0001>

<llo_original>
// kernel: tpu_custom_call.1
$region0: #{tpu_custom_call.1}
  #allocation0 [shape = 'u32[]', space=smem, size = 0x4, offset = 0x4, fixed_abs, tag = 'smem constant byte address 0x4 - core index']
  #allocation1 [shape = 'u32[72,128]{1,0:T(1,128)}', space=vmem, size = 0x9000, scoped, tag = 'internal scratch']
  #allocation2 [shape = 'f32[16,32]{1,0:T(8,128)}', space=vmem, size = 0x2000, scoped, tag = 'scratch operand']
  %s0 = inlined_call_operand.hbm [shape: f32[16,32], index: 0, kind: input, shape index: {}]
  %s1 = inlined_call_operand.hbm [shape: f32[32,32], index: 1, kind: input, shape index: {}]
  %s2 = inlined_call_operand.vmem [shape: f32[1,32], index: 2, kind: input, shape index: {}]
  %s3 = inlined_call_operand.hbm [shape: f32[1,32], index: 3, kind: input, shape index: {}]
  %s4 = inlined_call_operand.hbm [shape: f32[1,32], index: 4, kind: input, shape index: {}]
  %s5 = inlined_call_operand.hbm [shape: f32[32,256], index: 5, kind: input, shape index: {}]
  %s6 = inlined_call_operand.vmem [shape: f32[1,256], index: 6, kind: input, shape index: {}]
  %s7 = inlined_call_operand.hbm [shape: f32[16,256], index: 7, kind: output, shape index: {}]
  %s8 = sld [smem:[#allocation0]]
  $region62: #{tpu_custom_call.1} parent=0
    _
  %s10 = ssub.s32 1, %s8
  %s11 = scalar_select 0, %s10, %s8
  $region1: #{tpu_custom_call.1} parent=0
    #allocation3 [shape = 'u8[8192]{0}', space=vmem, size = 0x2000, scoped, tag = 'input window, operand 0, single buffered']
    #allocation4 [shape = 's32[1]{0}', space=sflag, size = 0x4, scoped, tag = 'scoped memory for tpu_custom_call.1']
    #allocation5 [shape = 's32[1]{0}', space=sflag, size = 0x4, scoped, tag = 'scoped memory for tpu_custom_call.1']
    #allocation6 [shape = 'u8[16384]{0}', space=vmem, size = 0x4000, scoped, tag = 'input window, operand 1, single buffered']
    #allocation7 [shape = 's32[1]{0}', space=sflag, size = 0x4, scoped, tag = 'scoped memory for tpu_custom_call.1']
    #allocation8 [shape = 'u8[512]{0}', space=vmem, size = 0x400, scoped, tag = 'input window, operand 3, single buffered']
    #allocation9 [shape = 'u8[512]{0}', space=vmem, size = 0x400, scoped, tag = 'input window, operand 4, single buffered']
    #allocation10 [shape = 's32[1]{0}', space=sflag, size = 0x4, scoped, tag = 'scoped memory for tpu_custom_call.1']
    #allocation11 [shape = 'u8[32768]{0}', space=vmem, size = 0x8000, scoped, tag = 'input window, operand 5, single buffered']
    #allocation12 [shape = 'u8[16384]{0}', space=vmem, size = 0x4000, scoped, tag = 'output window, operand 0, single buffered']
    %12 = vsyncpa [#allocation4], 0
    %13 = vsyncpa [#allocation7], 0
    %14 = vsyncpa [#allocation10], 0
    %15 = vsyncpa [#allocation5], 0
    // Predicated region
    $region2: #{tpu_custom_call.1} parent=1 // pred_check
      _
    $region3: #{tpu_custom_call.1} parent=1 // pred_check_branch
      %17 = sbr.rel (0) target = $region5
    $region4: #{tpu_custom_call.1} parent=1 // pred_region
      %19 = vsyncadd [#allocation4], 0
      %s20 = sshll.u32 %s0, 4
      %s21 = int_to_ptr.hbm [resolvable:$true] %s20
      %s22 = sshll.u32 [#allocation3], 4
      %s23 = int_to_ptr.vmem [resolvable:$true] %s22
      %28 = dma.hbm_to_vmem [thread:$0]  %s21, 256, %s23, [#allocation4], 128, 128, 8
    $region5: #{tpu_custom_call.1} parent=1 // pred_fallthru
      _
    // Predicated region
    $region6: #{tpu_custom_call.1} parent=1 // pred_check
      _
    $region7: #{tpu_custom_call.1} parent=1 // pred_check_branch
      %30 = sbr.rel (0) target = $region9
    $region8: #{tpu_custom_call.1} parent=1 // pred_region
      %32 = vsyncadd [#allocation7], 0
      %s33 = sshll.u32 %s1, 4
      %s34 = int_to_ptr.hbm [resolvable:$true] %s33
      %s35 = sshll.u32 [#allocation6], 4
      %s36 = int_to_ptr.vmem [resolvable:$true] %s35
      %41 = dma.hbm_to_vmem [thread:$0]  %s34, 512, %s36, [#allocation7], 128, 128, 8
    $region9: #{tpu_custom_call.1} parent=1 // pred_fallthru
      _
    // Predicated region
    $region10: #{tpu_custom_call.1} parent=1 // pred_check
      _
    $region11: #{tpu_custom_call.1} parent=1 // pred_check_branch
      %43 = sbr.rel (0) target = $region13
    $region12: #{tpu_custom_call.1} parent=1 // pred_region
      _
    $region13: #{tpu_custom_call.1} parent=1 // pred_fallthru
      _
    // Predicated region
    $region14: #{tpu_custom_call.1} parent=1 // pred_check
      _
    $region15: #{tpu_custom_call.1} parent=1 // pred_check_branch
      %45 = sbr.rel (0) target = $region17
    $region16: #{tpu_custom_call.1} parent=1 // pred_region
      %47 = vsyncadd [#allocation7], 0
      %s49 = sshll.u32 %s3, 4
      %s50 = int_to_ptr.hbm [resolvable:$true] %s49
      %s51 = sshll.u32 [#allocation8], 4
      %s52 = int_to_ptr.vmem [resolvable:$true] %s51
      %54 = dma.hbm_to_vmem [thread:$0]  %s50, 16, %s52, [#allocation7]
    $region17: #{tpu_custom_call.1} parent=1 // pred_fallthru
      _
    // Predicated region
    $region18: #{tpu_custom_call.1} parent=1 // pred_check
      _
    $region19: #{tpu_custom_call.1} parent=1 // pred_check_branch
      %56 = sbr.rel (0) target = $region21
    $region20: #{tpu_custom_call.1} parent=1 // pred_region
      %58 = vsyncadd [#allocation10], 0
      %s60 = sshll.u32 %s4, 4
      %s61 = int_to_ptr.hbm [resolvable:$true] %s60
      %s62 = sshll.u32 [#allocation9], 4
      %s63 = int_to_ptr.vmem [resolvable:$true] %s62
      %65 = dma.hbm_to_vmem [thread:$0]  %s61, 16, %s63, [#allocation10]
    $region21: #{tpu_custom_call.1} parent=1 // pred_fallthru
      _
    // Predicated region
    $region22: #{tpu_custom_call.1} parent=1 // pred_check
      _
    $region23: #{tpu_custom_call.1} parent=1 // pred_check_branch
      %67 = sbr.rel (0) target = $region25
    $region24: #{tpu_custom_call.1} parent=1 // pred_region
      %69 = vsyncadd [#allocation10], 0
      %s70 = sshll.u32 %s5, 4
      %s71 = int_to_ptr.hbm [resolvable:$true] %s70
      %s72 = sshll.u32 [#allocation11], 4
      %s73 = int_to_ptr.vmem [resolvable:$true] %s72
      %78 = dma.hbm_to_vmem [thread:$0]  %s71, 1024, %s73, [#allocation10], 256, 256, 16
    $region25: #{tpu_custom_call.1} parent=1 // pred_fallthru
      _
    // Predicated region
    $region26: #{tpu_custom_call.1} parent=1 // pred_check
      _
    $region27: #{tpu_custom_call.1} parent=1 // pred_check_branch
      %80 = sbr.rel (0) target = $region29
    $region28: #{tpu_custom_call.1} parent=1 // pred_region
      _
    $region29: #{tpu_custom_call.1} parent=1 // pred_fallthru
      _
    // Predicated region
    $region30: #{tpu_custom_call.1} parent=1 // pred_check
      _
    $region31: #{tpu_custom_call.1} parent=1 // pred_check_branch
      %82 = sbr.rel (0) target = $region33
    $region32: #{tpu_custom_call.1} parent=1 // pred_region
      %84 = dma.done [#allocation4], 256
    $region33: #{tpu_custom_call.1} parent=1 // pred_fallthru
      _
    // Predicated region
    $region34: #{tpu_custom_call.1} parent=1 // pred_check
      _
    $region35: #{tpu_custom_call.1} parent=1 // pred_check_branch
      %86 = sbr.rel (0) target = $region37
    $region36: #{tpu_custom_call.1} parent=1 // pred_region
      %88 = dma.done [#allocation7], 512
    $region37: #{tpu_custom_call.1} parent=1 // pred_fallthru
      _
    // Predicated region
    $region38: #{tpu_custom_call.1} parent=1 // pred_check
      _
    $region39: #{tpu_custom_call.1} parent=1 // pred_check_branch
      %90 = sbr.rel (0) target = $region41
    $region40: #{tpu_custom_call.1} parent=1 // pred_region
      %92 = dma.done [#allocation7], 16
    $region41: #{tpu_custom_call.1} parent=1 // pred_fallthru
      _
    // Predicated region
    $region42: #{tpu_custom_call.1} parent=1 // pred_check
      _
    $region43: #{tpu_custom_call.1} parent=1 // pred_check_branch
      %94 = sbr.rel (0) target = $region45
    $region44: #{tpu_custom_call.1} parent=1 // pred_region
      %96 = dma.done [#allocation10], 16
    $region45: #{tpu_custom_call.1} parent=1 // pred_fallthru
      _
    // Predicated region
    $region46: #{tpu_custom_call.1} parent=1 // pred_check
      _
    $region47: #{tpu_custom_call.1} parent=1 // pred_check_branch
      %98 = sbr.rel (0) target = $region49
    $region48: #{tpu_custom_call.1} parent=1 // pred_region
      %100 = dma.done [#allocation10], 1024
    $region49: #{tpu_custom_call.1} parent=1 // pred_fallthru
      _
    %p101 = scmp.eq.s32.totalorder 0, 0
    // Predicated region
    $region50: #{tpu_custom_call.1} parent=1 // pred_check
      %p102 = pneg %p101
    $region51: #{tpu_custom_call.1} parent=1 // pred_check_branch
      %104 = sbr.rel (%p102) target = $region53
    $region52: #{tpu_custom_call.1} parent=1 // pred_region
      %v105 = vld [vmem:[#allocation3] sm:$0xff]
      %v106 = vld [vmem:[#allocation3 + $0x8] sm:$0xff]
      %v107 = vld [vmem:[#allocation6] sm:$0xff]
      %v108 = vld [vmem:[#allocation6 + $0x8] sm:$0xff]
      %v109 = vld [vmem:[#allocation6 + $0x10] sm:$0xff]
      %v110 = vld [vmem:[#allocation6 + $0x18] sm:$0xff]
      %v111 = vld [vmem:[%s2] sm:$0x1]
      %v113 = vperm.slane %v111, 0
      %vm115 = vcmask 261120
      %v117 = vsel %vm115, %v105, 0
      %v120 = vsel %vm115, %v106, 0
      %122 = vmatpush.msra.mxu0 0.0
      %123 = vmatpush.msra.mxu0 0.0
      %124 = vmatpush.msra.mxu0 0.0
      %125 = vmatpush.msra.mxu0 0.0
      %126 = vmatpush.msra.mxu0 0.0
      %127 = vmatpush.msra.mxu0 0.0
      %128 = vmatpush.msra.mxu0 0.0
      %129 = vmatpush.msra.mxu0 0.0
      %130 = vmatpush.msra.mxu0 0.0
      %131 = vmatpush.msra.mxu0 0.0
      %132 = vmatpush.msra.mxu0 0.0
      %133 = vmatpush.msra.mxu0 0.0
      %134 = vmatpush.msra.mxu0 %v110
      %135 = vmatpush.msra.mxu0 %v109
      %136 = vmatpush.msra.mxu0 %v108
      %137 = vmatpush.msra.mxu0 %v107
      %138 = vmatmul.f32.gmra.mxu0 %v117
      %v139 = vpop.f32.mrf.mxu0
      %v140 = vadd.f32 %v113, %v139
      %141 = vmatmul.f32.gmra.mxu0 %v120
      %v142 = vpop.f32.mrf.mxu0
      %v143 = vadd.f32 %v113, %v142
      %144 = vdwg.mxu0
      %v145 = vmax.f32 %v140, 0.0
      %v146 = vmax.f32 %v143, 0.0
      %v147 = vsel %vm115, %v145, 0.0
      %148 = vadd.xlane.f32.xlu0 %v147
      %v149 = vpop.xlane.xlu0 %148
      %v150 = vsel %vm115, %v146, 0.0
      %151 = vadd.xlane.f32.xlu0 %v150
      %v152 = vpop.xlane.xlu0 %151
      %v153 = vrcp.pop 32.0
      %v154 = vmul.f32 32.0, %v153
      %v155 = vsub.f32 1.0, %v154
      %v156 = vmul.f32 %v153, %v155
      %v157 = vadd.f32 %v153, %v156
      %vm158 = vweird.f32 %v153
      %v159 = vsel %vm158, %v153, %v157
      %v160 = vmul.f32 %v149, %v159
      %v161 = vmul.f32 %v152, %v159
      %v162 = vsub.f32 %v145, %v160
      %v163 = vsub.f32 %v146, %v161
      %v164 = vmul.f32 %v162, %v162
      %v165 = vmul.f32 %v163, %v163
      %v166 = vsel %vm115, %v164, 0.0
      %167 = vadd.xlane.f32.xlu0 %v166
      %v168 = vpop.xlane.xlu0 %167
      %v169 = vsel %vm115, %v165, 0.0
      %170 = vadd.xlane.f32.xlu0 %v169
      %v171 = vpop.xlane.xlu0 %170
      %v172 = vmul.f32 %v168, %v159
      %v173 = vmul.f32 %v171, %v159
      %v174 = vadd.f32 %v172, 1e-12
      %v175 = vadd.f32 %v173, 1e-12
      %v176 = vrsqrt.pop %v174
      %v177 = vmul.f32 %v176, %v174
      %v178 = vmul.f32 %v177, %v176
      %v179 = vmul.f32 0.5, %v178
      %v180 = vsub.f32 1.5, %v179
      %v181 = vmul.f32 %v176, %v180
      %vm182 = vweird.f32 %v174
      %vm183 = vweird.f32 %v176
      %vm184 = vmor %vm182, %vm183
      %v185 = vsel %vm184, %v176, %v181
      %v186 = vrsqrt.pop %v175
      %v187 = vmul.f32 %v186, %v175
      %v188 = vmul.f32 %v187, %v186
      %v189 = vmul.f32 0.5, %v188
      %v190 = vsub.f32 1.5, %v189
      %v191 = vmul.f32 %v186, %v190
      %vm192 = vweird.f32 %v175
      %vm193 = vweird.f32 %v186
      %vm194 = vmor %vm192, %vm193
      %v195 = vsel %vm194, %v186, %v191
      %v196 = vmul.f32 %v162, %v185
      %v197 = vmul.f32 %v163, %v195
      %v198 = vld [vmem:[#allocation8] sm:$0x1]
      %v200 = vperm.slane %v198, 0
      %v202 = vmul.f32 %v196, %v200
      %v203 = vmul.f32 %v197, %v200
      %v204 = vld [vmem:[#allocation9] sm:$0x1]
      %v206 = vperm.slane %v204, 0
      %v208 = vadd.f32 %v202, %v206
      %v209 = vadd.f32 %v203, %v206
      %210 = vst.msk [vmem:[#allocation2] sm:$0xff] %vm115, %v208
      %211 = vst.msk [vmem:[#allocation2 + $0x8] sm:$0xff] %vm115, %v209
    $region53: #{tpu_custom_call.1} parent=1 // pred_fallthru
      _
    %v212 = vld [vmem:[#allocation2] sm:$0xff]
    %v213 = vld [vmem:[#allocation2 + $0x8] sm:$0xff]
    %v214 = vld [vmem:[#allocation11] sm:$0xff]
    %v215 = vld [vmem:[#allocation11 + $0x8] sm:$0xff]
    %v216 = vld [vmem:[#allocation11 + $0x10] sm:$0xff]
    %v217 = vld [vmem:[#allocation11 + $0x18] sm:$0xff]
    %v218 = vld [vmem:[#allocation11 + $0x20] sm:$0xff]
    %v219 = vld [vmem:[#allocation11 + $0x28] sm:$0xff]
    %v220 = vld [vmem:[#allocation11 + $0x30] sm:$0xff]
    %v221 = vld [vmem:[#allocation11 + $0x38] sm:$0xff]
    %v222 = vld [vmem:[%s6] sm:$0x3]
    %v224 = vperm.slane %v222, 0
    %v225 = vperm.slane %v222, 1
    %vm228 = vcmask 261120
    %v230 = vsel %vm228, %v212, 0
    %v233 = vsel %vm228, %v213, 0
    %235 = vmatpush.msra.mxu0 0.0
    %236 = vmatpush.msra.mxu0 0.0
    %237 = vmatpush.msra.mxu0 0.0
    %238 = vmatpush.msra.mxu0 0.0
    %239 = vmatpush.msra.mxu0 0.0
    %240 = vmatpush.msra.mxu0 0.0
    %241 = vmatpush.msra.mxu0 0.0
    %242 = vmatpush.msra.mxu0 0.0
    %243 = vmatpush.msra.mxu0 0.0
    %244 = vmatpush.msra.mxu0 0.0
    %245 = vmatpush.msra.mxu0 0.0
    %246 = vmatpush.msra.mxu0 0.0
    %247 = vmatpush.msra.mxu0 %v220
    %248 = vmatpush.msra.mxu0 %v218
    %249 = vmatpush.msra.mxu0 %v216
    %250 = vmatpush.msra.mxu0 %v214
    %251 = vmatmul.f32.gmra.mxu0 %v230
    %v252 = vpop.f32.mrf.mxu0
    %v253 = vadd.f32 %v224, %v252
    %254 = vmatmul.f32.gmra.mxu0 %v233
    %v255 = vpop.f32.mrf.mxu0
    %v256 = vadd.f32 %v224, %v255
    %257 = vdwg.mxu0
    %258 = vmatpush.msra.mxu0 0.0
    %259 = vmatpush.msra.mxu0 0.0
    %260 = vmatpush.msra.mxu0 0.0
    %261 = vmatpush.msra.mxu0 0.0
    %262 = vmatpush.msra.mxu0 0.0
    %263 = vmatpush.msra.mxu0 0.0
    %264 = vmatpush.msra.mxu0 0.0
    %265 = vmatpush.msra.mxu0 0.0
    %266 = vmatpush.msra.mxu0 0.0
    %267 = vmatpush.msra.mxu0 0.0
    %268 = vmatpush.msra.mxu0 0.0
    %269 = vmatpush.msra.mxu0 0.0
    %270 = vmatpush.msra.mxu0 %v221
    %271 = vmatpush.msra.mxu0 %v219
    %272 = vmatpush.msra.mxu0 %v217
    %273 = vmatpush.msra.mxu0 %v215
    %274 = vmatmul.f32.gmra.mxu0 %v230
    %v275 = vpop.f32.mrf.mxu0
    %v276 = vadd.f32 %v225, %v275
    %277 = vmatmul.f32.gmra.mxu0 %v233
    %v278 = vpop.f32.mrf.mxu0
    %v279 = vadd.f32 %v225, %v278
    %280 = vdwg.mxu0
    %281 = vst [vmem:[#allocation12] sm:$0xff] %v253
    %282 = vst [vmem:[#allocation12 + $0x8] sm:$0xff] %v276
    %283 = vst [vmem:[#allocation12 + $0x10] sm:$0xff] %v256
    %284 = vst [vmem:[#allocation12 + $0x18] sm:$0xff] %v279
    // Predicated region
    $region54: #{tpu_custom_call.1} parent=1 // pred_check
      _
    $region55: #{tpu_custom_call.1} parent=1 // pred_check_branch
      %286 = sbr.rel (0) target = $region57
    $region56: #{tpu_custom_call.1} parent=1 // pred_region
      %288 = vsyncadd [#allocation5], 0
      %s289 = sshll.u32 [#allocation12], 4
      %s290 = int_to_ptr.vmem [resolvable:$true] %s289
      %s291 = sshll.u32 %s7, 4
      %s292 = int_to_ptr.hbm [resolvable:$true] %s291
      %297 = dma.vmem_to_hbm [thread:$0]  %s290, 512, %s292, [#allocation5], 256, 256, 16
    $region57: #{tpu_custom_call.1} parent=1 // pred_fallthru
      _
    // Predicated region
    $region58: #{tpu_custom_call.1} parent=1 // pred_check
      _
    $region59: #{tpu_custom_call.1} parent=1 // pred_check_branch
      %299 = sbr.rel (0) target = $region61
    $region60: #{tpu_custom_call.1} parent=1 // pred_region
      %301 = dma.done [#allocation5], 512
    $region61: #{tpu_custom_call.1} parent=1 // pred_fallthru
      _
    %302 = vsyncpa [#allocation4], 1
    %303 = vsyncpa [#allocation7], 1
    %304 = vsyncpa [#allocation10], 1
    %305 = vsyncpa [#allocation5], 1

</llo_original>
